<compile_context>
chip_gen: v7x
topology: tpu7x:2x2x1
jax: 0.10.0
libtpu: 0.0.40
codegen_flags: <defaults>
</compile_context>

<pallas_src>
import functools

import jax
import jax.numpy as jnp
import numpy as np
from jax import lax
from jax.experimental import pallas as pl
from jax.experimental.pallas import tpu as pltpu


def _round_up(x, m):
    return ((x + m - 1) // m) * m


def _residual_mlp_kernel(num_hidden_layers, matmul_precision,
                         x_ref, w_in_ref, b_in_ref, w_mid_ref, b_mid_ref,
                         w_out_ref, b_out_ref, o_ref):
    """One batch tile of the full forward pass (transposed (H, TB) layout).

      x_ref     : (1, 1, TB)  input tile, batch on lanes, f32
      w_in_ref  : (H, 1)      layer_in weight (torch (out,in) orientation), f32
      b_in_ref  : (H, 1)      layer_in bias, f32
      w_mid_ref : (L, H, H)   stacked middle-layer weights, matmul dtype (bf16/f32)
      b_mid_ref : (L, H, 1)   stacked middle-layer biases, f32
      w_out_ref : (H, 1)      layer_out weight stored as a column, f32
      b_out_ref : (1, 1)      layer_out bias, f32
      o_ref     : (1, 1, TB)  output tile, batch on lanes, f32
    """
    x = x_ref[0]                                        # (1, TB)

    # layer_in: Linear(1, H) == outer product (VPU broadcast) + bias.
    h = w_in_ref[...] * x + b_in_ref[...]               # (H, TB) f32

    # Residual blocks: h = tanh(W @ h + b) + h.
    # Matmul in the weights' dtype (bf16 by default -> native MXU path) with
    # f32 accumulation; bias add on VPU, tanh on EUP; residual stream stays f32.
    mx_dtype = w_mid_ref.dtype
    for k in range(num_hidden_layers):
        z = jnp.dot(w_mid_ref[k], h.astype(mx_dtype),
                    preferred_element_type=jnp.float32,
                    precision=matmul_precision)
        z = z + b_mid_ref[k]                            # (H, TB) + (H, 1)
        h = jnp.tanh(z) + h

    # layer_out: Linear(H, 1).  An M=1 MXU matmul pays full fill/drain latency
    # for almost no work, so do it as a VPU multiply + XLU cross-sublane sum.
    out = jnp.sum(w_out_ref[...] * h, axis=0, keepdims=True)    # (1, TB)
    out = out + b_out_ref[...]
    o_ref[0] = out.astype(o_ref.dtype)


def residual_mlp_forward(x, params, *, num_hidden_layers, tile_batch=4096,
                         matmul_dtype=jnp.bfloat16):
    """x: (B,) single scalar input per example (input_dim=1). Returns (B,)."""
    assert num_hidden_layers >= 1
    B = x.shape[0]
    H = params["w_in"].shape[0]
    L = num_hidden_layers

    # Batch tile on the lane axis.  Large tiles amortize the ~0.35us per-grid-
    # step overhead (this kernel is overhead-bound at small H), but cap TB at
    # ceil(B/2) so there are >=2 grid steps whenever B allows it and both v7x
    # TensorCores get work under dimension_semantics=("parallel",).
    TB = _round_up(max(128, min(int(tile_batch), pl.cdiv(B, 2))), 128)
    B_pad = _round_up(B, TB)
    G = B_pad // TB

    # torch.stack((x,), dim=1) / zero-padding / layout glue (not the hot path).
    x_pad = jnp.zeros((B_pad,), jnp.float32).at[:B].set(x.astype(jnp.float32))
    x3d = x_pad.reshape(G, 1, TB)

    # MXU-facing weights pre-cast in the wrapper: bf16 is the MXU's native
    # input dtype on v5e/v6e/v7x and halves the resident VMEM footprint.
    # matmul_dtype=float32 uses Precision.HIGHEST for PyTorch-f32 parity.
    w_mid = params["w_mid"].astype(matmul_dtype)
    matmul_precision = (lax.Precision.HIGHEST
                        if jnp.dtype(matmul_dtype) == jnp.dtype(jnp.float32)
                        else None)

    operands = (x3d,
                params["w_in"], params["b_in"],
                w_mid, params["b_mid"],
                params["w_out"], params["b_out"])

    # Constant-index-map operands are DMA'd once and stay resident in VMEM;
    # single-buffer them (the default 2 buffers would double their footprint).
    resident = dict(pipeline_mode=pl.Buffered(1))
    in_specs = [
        pl.BlockSpec((1, 1, TB), lambda i: (i, 0, 0)),              # x tile (streamed)
        pl.BlockSpec((H, 1), lambda i: (0, 0), **resident),         # layer_in W
        pl.BlockSpec((H, 1), lambda i: (0, 0), **resident),         # layer_in b
        pl.BlockSpec((L, H, H), lambda i: (0, 0, 0), **resident),   # middle Ws (stacked)
        pl.BlockSpec((L, H, 1), lambda i: (0, 0, 0), **resident),   # middle bs (stacked)
        pl.BlockSpec((H, 1), lambda i: (0, 0), **resident),         # layer_out W (column)
        pl.BlockSpec((1, 1), lambda i: (0, 0), **resident),         # layer_out b
    ]
    out_spec = pl.BlockSpec((1, 1, TB), lambda i: (i, 0, 0))        # lane-dense store

    # VMEM budget computed from actual block footprints (lane padding of the
    # (..,1) columns included) plus activation/spill headroom; clamped below
    # v7x's 64 MiB physical VMEM so one value is safe on v5e/v6e/v7x.
    lane = 128
    mx_bytes = jnp.dtype(matmul_dtype).itemsize
    w_mid_vmem = L * _round_up(H, 8) * _round_up(H, lane) * mx_bytes
    col_vmem = _round_up(H, 8) * lane * 4
    bias_vmem = (L + 3) * col_vmem + 8 * lane * 4       # b_mid, w_in, b_in, w_out, b_out
    stream_vmem = 2 * 2 * TB * 4                        # x & o tiles, double-buffered
    act_vmem = 4 * H * TB * 4                           # h / z / tanh + spill headroom
    vmem_limit = int(min(max(w_mid_vmem + bias_vmem + stream_vmem + act_vmem
                             + (4 << 20), 16 << 20), 48 << 20))

    # Advisory cost hint so XLA can schedule around this small custom call.
    weight_hbm_bytes = (w_mid.size * mx_bytes
                        + 4 * (params["b_mid"].size + params["w_in"].size
                               + params["b_in"].size + params["w_out"].size
                               + params["b_out"].size))
    cost = pl.CostEstimate(
        flops=2 * B_pad * H * H * L + 2 * B_pad * H * L + 6 * B_pad * H,
        transcendentals=B_pad * H * L,
        bytes_accessed=4 * 2 * B_pad + int(weight_hbm_bytes),
    )

    kernel = functools.partial(_residual_mlp_kernel, L, matmul_precision)
    out3d = pl.pallas_call(
        kernel,
        grid=(G,),
        in_specs=in_specs,
        out_specs=out_spec,
        out_shape=jax.ShapeDtypeStruct((G, 1, TB), jnp.float32),
        compiler_params=pltpu.CompilerParams(
            dimension_semantics=("parallel",),    # shard batch tiles across TCs (v7x)
            vmem_limit_bytes=vmem_limit,
        ),
        cost_estimate=cost,
    )(*operands)

    # torch.squeeze(out, dim=1) + drop batch padding -> (B,)
    return out3d.reshape(B_pad)[:B]


def init_params(key, input_dim, hidden_dim, num_hidden_layers):
    """PyTorch-Linear-style init (U[-1/sqrt(fan_in), 1/sqrt(fan_in)]).

    Middle weights kept in the native torch (out_features, in_features)
    orientation; biases and the layer_out weight are stored as columns so the
    kernel's transposed (features-on-sublanes) layout uses them directly.
    """
    assert input_dim == 1  # the module stacks scalar inputs along dim=1

    def uniform(k, shape, fan_in):
        bound = 1.0 / np.sqrt(fan_in)
        return jax.random.uniform(k, shape, jnp.float32, -bound, bound)

    keys = jax.random.split(key, 2 * (num_hidden_layers + 2))
    params = {}
    params["w_in"] = uniform(keys[0], (hidden_dim, 1), input_dim)       # (H, 1)
    params["b_in"] = uniform(keys[1], (hidden_dim, 1), input_dim)       # (H, 1)
    w_mid, b_mid = [], []
    for k in range(num_hidden_layers):
        w_mid.append(uniform(keys[2 + 2 * k], (hidden_dim, hidden_dim), hidden_dim))
        b_mid.append(uniform(keys[3 + 2 * k], (hidden_dim, 1), hidden_dim))
    params["w_mid"] = jnp.stack(w_mid)                                   # (L, H, H)
    params["b_mid"] = jnp.stack(b_mid)                                   # (L, H, 1)
    params["w_out"] = uniform(keys[-2], (hidden_dim, 1), hidden_dim)     # (H, 1) column
    params["b_out"] = uniform(keys[-1], (1, 1), hidden_dim)              # (1, 1)
    return params


def reference_forward(x, params, *, num_hidden_layers, matmul_dtype=jnp.float32):
    """Pure-JAX reference mirroring the PyTorch module, with the same explicit
    matmul dtype/precision handling as the kernel (apples-to-apples check)."""
    precision = (lax.Precision.HIGHEST
                 if jnp.dtype(matmul_dtype) == jnp.dtype(jnp.float32) else None)
    w_mid = params["w_mid"].astype(matmul_dtype)
    x = x.astype(jnp.float32)
    h = x[:, None] * params["w_in"][:, 0][None, :] + params["b_in"][:, 0][None, :]
    for k in range(num_hidden_layers):
        z = jnp.dot(h.astype(matmul_dtype), w_mid[k].T,
                    preferred_element_type=jnp.float32, precision=precision)
        z = z + params["b_mid"][k][:, 0][None, :]
        h = jnp.tanh(z) + h
    out = jnp.sum(h * params["w_out"][:, 0][None, :], axis=1) + params["b_out"][0, 0]
    return out


if __name__ == "__main__":
    INPUT_DIM = 1          # module stacks scalar inputs along dim=1
    HIDDEN_DIM = 32
    NUM_HIDDEN_LAYERS = 2
    BATCH = 8

    key = jax.random.PRNGKey(0)
    kx, kp, kx2 = jax.random.split(key, 3)
    x = jax.random.normal(kx, (BATCH,), dtype=jnp.float32)
    params = init_params(kp, INPUT_DIM, HIDDEN_DIM, NUM_HIDDEN_LAYERS)

    # Default bf16-MXU path.
    out = residual_mlp_forward(x, params, num_hidden_layers=NUM_HIDDEN_LAYERS)
    out = jax.block_until_ready(out)
    ref = reference_forward(x, params, num_hidden_layers=NUM_HIDDEN_LAYERS,
                            matmul_dtype=jnp.bfloat16)
    np.testing.assert_allclose(np.asarray(out), np.asarray(ref),
                               rtol=5e-3, atol=1e-3)
    assert out.shape == (BATCH,)

    # Explicit f32 + Precision.HIGHEST path (PyTorch-f32 parity).
    out_f32 = residual_mlp_forward(x, params, num_hidden_layers=NUM_HIDDEN_LAYERS,
                                   matmul_dtype=jnp.float32)
    out_f32 = jax.block_until_ready(out_f32)
    ref_f32 = reference_forward(x, params, num_hidden_layers=NUM_HIDDEN_LAYERS,
                                matmul_dtype=jnp.float32)
    np.testing.assert_allclose(np.asarray(out_f32), np.asarray(ref_f32),
                               rtol=1e-4, atol=1e-5)

    # Multi-tile grid (G > 1, exercises megacore sharding) and a
    # non-multiple-of-128 batch with padding.
    x2 = jax.random.normal(kx2, (300,), dtype=jnp.float32)
    out2 = residual_mlp_forward(x2, params, num_hidden_layers=NUM_HIDDEN_LAYERS,
                                tile_batch=128)
    out2 = jax.block_until_ready(out2)
    ref2 = reference_forward(x2, params, num_hidden_layers=NUM_HIDDEN_LAYERS,
                             matmul_dtype=jnp.bfloat16)
    np.testing.assert_allclose(np.asarray(out2), np.asarray(ref2),
                               rtol=5e-3, atol=1e-3)
    assert out2.shape == (300,)

    print("KERNEL_OK")
</pallas_src>

<mosaic_0001>
module attributes {stable_mosaic.version = 11 : i64} {
  func.func @_residual_mlp_kernel(%arg0: i32, %arg1: memref<1x1x128xf32, #tpu.memory_space<vmem>>, %arg2: memref<32x1xf32, #tpu.memory_space<vmem>>, %arg3: memref<32x1xf32, #tpu.memory_space<vmem>>, %arg4: memref<2x32x32xbf16, #tpu.memory_space<vmem>>, %arg5: memref<2x32x1xf32, #tpu.memory_space<vmem>>, %arg6: memref<32x1xf32, #tpu.memory_space<vmem>>, %arg7: memref<1x1xf32, #tpu.memory_space<vmem>>, %arg8: memref<1x1x128xf32, #tpu.memory_space<vmem>>) attributes {dimension_semantics = [#tpu.dimension_semantics<parallel>], iteration_bounds = array<i64: 1>, scalar_prefetch = 0 : i64, scratch_operands = 0 : i64, tpu.core_type = #tpu.core_type<tc>, window_params = [{transform_indices = @transform_0, window_bounds = array<i64: 1, 1, 128>}, {pipeline_mode = #tpu.pipeline_mode<synchronous>, transform_indices = @transform_1, window_bounds = array<i64: 32, 1>}, {pipeline_mode = #tpu.pipeline_mode<synchronous>, transform_indices = @transform_2, window_bounds = array<i64: 32, 1>}, {pipeline_mode = #tpu.pipeline_mode<synchronous>, transform_indices = @transform_3, window_bounds = array<i64: 2, 32, 32>}, {pipeline_mode = #tpu.pipeline_mode<synchronous>, transform_indices = @transform_4, window_bounds = array<i64: 2, 32, 1>}, {pipeline_mode = #tpu.pipeline_mode<synchronous>, transform_indices = @transform_5, window_bounds = array<i64: 32, 1>}, {pipeline_mode = #tpu.pipeline_mode<synchronous>, transform_indices = @transform_6, window_bounds = array<i64: 1, 1>}, {transform_indices = @transform_7, window_bounds = array<i64: 1, 1, 128>}]} {
    %c0 = arith.constant 0 : index
    %c0_0 = arith.constant 0 : index
    %c0_1 = arith.constant 0 : index
    %0 = vector.load %arg1[%c0, %c0_0, %c0_1] : memref<1x1x128xf32, #tpu.memory_space<vmem>>, vector<1x1x128xf32>
    %1 = vector.shape_cast %0 : vector<1x1x128xf32> to vector<1x128xf32>
    %c0_2 = arith.constant 0 : index
    %c0_3 = arith.constant 0 : index
    %2 = vector.load %arg2[%c0_2, %c0_3] : memref<32x1xf32, #tpu.memory_space<vmem>>, vector<32x1xf32>
    %3 = vector.broadcast %2 : vector<32x1xf32> to vector<32x128xf32>
    %4 = vector.broadcast %1 : vector<1x128xf32> to vector<32x128xf32>
    %5 = arith.mulf %3, %4 : vector<32x128xf32>
    %c0_4 = arith.constant 0 : index
    %c0_5 = arith.constant 0 : index
    %6 = vector.load %arg3[%c0_4, %c0_5] : memref<32x1xf32, #tpu.memory_space<vmem>>, vector<32x1xf32>
    %7 = vector.broadcast %6 : vector<32x1xf32> to vector<32x128xf32>
    %8 = arith.addf %5, %7 : vector<32x128xf32>
    %c0_6 = arith.constant 0 : index
    %c0_7 = arith.constant 0 : index
    %c0_8 = arith.constant 0 : index
    %9 = vector.load %arg4[%c0_6, %c0_7, %c0_8] : memref<2x32x32xbf16, #tpu.memory_space<vmem>>, vector<1x32x32xbf16>
    %10 = vector.shape_cast %9 : vector<1x32x32xbf16> to vector<32x32xbf16>
    %11 = arith.truncf %8 : vector<32x128xf32> to vector<32x128xbf16>
    %cst = arith.constant dense<0.000000e+00> : vector<32x128xf32>
    %12 = tpu.matmul %10, %11, %cst {dimension_numbers = #tpu.dot_dimension_numbers<[1], [0], [0], [1], [0, 0, 1, 1], [], []>} : vector<32x32xbf16>, vector<32x128xbf16>, vector<32x128xf32> -> vector<32x128xf32>
    %c0_9 = arith.constant 0 : index
    %c0_10 = arith.constant 0 : index
    %c0_11 = arith.constant 0 : index
    %13 = vector.load %arg5[%c0_9, %c0_10, %c0_11] : memref<2x32x1xf32, #tpu.memory_space<vmem>>, vector<1x32x1xf32>
    %14 = vector.shape_cast %13 : vector<1x32x1xf32> to vector<32x1xf32>
    %15 = vector.broadcast %14 : vector<32x1xf32> to vector<32x128xf32>
    %16 = arith.addf %12, %15 : vector<32x128xf32>
    %17 = math.tanh %16 : vector<32x128xf32>
    %18 = arith.addf %17, %8 : vector<32x128xf32>
    %c1 = arith.constant 1 : index
    %c0_12 = arith.constant 0 : index
    %c0_13 = arith.constant 0 : index
    %19 = vector.load %arg4[%c1, %c0_12, %c0_13] : memref<2x32x32xbf16, #tpu.memory_space<vmem>>, vector<1x32x32xbf16>
    %20 = vector.shape_cast %19 : vector<1x32x32xbf16> to vector<32x32xbf16>
    %21 = arith.truncf %18 : vector<32x128xf32> to vector<32x128xbf16>
    %cst_14 = arith.constant dense<0.000000e+00> : vector<32x128xf32>
    %22 = tpu.matmul %20, %21, %cst_14 {dimension_numbers = #tpu.dot_dimension_numbers<[1], [0], [0], [1], [0, 0, 1, 1], [], []>} : vector<32x32xbf16>, vector<32x128xbf16>, vector<32x128xf32> -> vector<32x128xf32>
    %c1_15 = arith.constant 1 : index
    %c0_16 = arith.constant 0 : index
    %c0_17 = arith.constant 0 : index
    %23 = vector.load %arg5[%c1_15, %c0_16, %c0_17] : memref<2x32x1xf32, #tpu.memory_space<vmem>>, vector<1x32x1xf32>
    %24 = vector.shape_cast %23 : vector<1x32x1xf32> to vector<32x1xf32>
    %25 = vector.broadcast %24 : vector<32x1xf32> to vector<32x128xf32>
    %26 = arith.addf %22, %25 : vector<32x128xf32>
    %27 = math.tanh %26 : vector<32x128xf32>
    %28 = arith.addf %27, %18 : vector<32x128xf32>
    %c0_18 = arith.constant 0 : index
    %c0_19 = arith.constant 0 : index
    %29 = vector.load %arg6[%c0_18, %c0_19] : memref<32x1xf32, #tpu.memory_space<vmem>>, vector<32x1xf32>
    %30 = vector.broadcast %29 : vector<32x1xf32> to vector<32x128xf32>
    %31 = arith.mulf %30, %28 : vector<32x128xf32>
    %cst_20 = arith.constant dense<0.000000e+00> : vector<128xf32>
    %32 = vector.multi_reduction <add>, %31, %cst_20 [0] : vector<32x128xf32> to vector<128xf32>
    %33 = vector.shape_cast %32 : vector<128xf32> to vector<1x128xf32>
    %c0_21 = arith.constant 0 : index
    %c0_22 = arith.constant 0 : index
    %34 = vector.load %arg7[%c0_21, %c0_22] : memref<1x1xf32, #tpu.memory_space<vmem>>, vector<1x1xf32>
    %35 = vector.broadcast %34 : vector<1x1xf32> to vector<1x128xf32>
    %36 = arith.addf %33, %35 : vector<1x128xf32>
    %c0_23 = arith.constant 0 : index
    %c0_24 = arith.constant 0 : index
    %c0_25 = arith.constant 0 : index
    %37 = vector.load %arg8[%c0_23, %c0_24, %c0_25] : memref<1x1x128xf32, #tpu.memory_space<vmem>>, vector<1x1x128xf32>
    %38 = vector.shape_cast %37 : vector<1x1x128xf32> to vector<1x128xf32>
    %39 = vector.shape_cast %36 : vector<1x128xf32> to vector<1x1x128xf32>
    tpu.vector_store %arg8[%c0_23, %c0_24, %c0_25], %39 {strides = array<i32>} : memref<1x1x128xf32, #tpu.memory_space<vmem>>, vector<1x1x128xf32>,
    return
  }
  func.func @transform_0(%arg0: i32) -> (i32, i32, i32) {
    %c0_i32 = arith.constant 0 : i32
    %c0_i32_0 = arith.constant 0 : i32
    %c0_i32_1 = arith.constant 0 : i32
    return %arg0, %c0_i32, %c0_i32_0 : i32, i32, i32
  }
  func.func @transform_1(%arg0: i32) -> (i32, i32) {
    %c0_i32 = arith.constant 0 : i32
    %c0_i32_0 = arith.constant 0 : i32
    %c0_i32_1 = arith.constant 0 : i32
    return %c0_i32, %c0_i32_0 : i32, i32
  }
  func.func @transform_2(%arg0: i32) -> (i32, i32) {
    %c0_i32 = arith.constant 0 : i32
    %c0_i32_0 = arith.constant 0 : i32
    %c0_i32_1 = arith.constant 0 : i32
    return %c0_i32, %c0_i32_0 : i32, i32
  }
  func.func @transform_3(%arg0: i32) -> (i32, i32, i32) {
    %c0_i32 = arith.constant 0 : i32
    %c0_i32_0 = arith.constant 0 : i32
    %c0_i32_1 = arith.constant 0 : i32
    %c0_i32_2 = arith.constant 0 : i32
    return %c0_i32, %c0_i32_0, %c0_i32_1 : i32, i32, i32
  }
  func.func @transform_4(%arg0: i32) -> (i32, i32, i32) {
    %c0_i32 = arith.constant 0 : i32
    %c0_i32_0 = arith.constant 0 : i32
    %c0_i32_1 = arith.constant 0 : i32
    %c0_i32_2 = arith.constant 0 : i32
    return %c0_i32, %c0_i32_0, %c0_i32_1 : i32, i32, i32
  }
  func.func @transform_5(%arg0: i32) -> (i32, i32) {
    %c0_i32 = arith.constant 0 : i32
    %c0_i32_0 = arith.constant 0 : i32
    %c0_i32_1 = arith.constant 0 : i32
    return %c0_i32, %c0_i32_0 : i32, i32
  }
  func.func @transform_6(%arg0: i32) -> (i32, i32) {
    %c0_i32 = arith.constant 0 : i32
    %c0_i32_0 = arith.constant 0 : i32
    %c0_i32_1 = arith.constant 0 : i32
    return %c0_i32, %c0_i32_0 : i32, i32
  }
  func.func @transform_7(%arg0: i32) -> (i32, i32, i32) {
    %c0_i32 = arith.constant 0 : i32
    %c0_i32_0 = arith.constant 0 : i32
    %c0_i32_1 = arith.constant 0 : i32
    return %arg0, %c0_i32, %c0_i32_0 : i32, i32, i32
  }
}

</mosaic_0001>

<llo_original>
// kernel: tpu_custom_call.1
$region0: #{tpu_custom_call.1}
  #allocation0 [shape = 'u32[]', space=smem, size = 0x4, offset = 0x4, fixed_abs, tag = 'smem constant byte address 0x4 - core index']
  #allocation1 [shape = 'u32[144,128]{1,0:T(1,128)}', space=vmem, size = 0x12000, scoped, tag = 'internal scratch']
  #allocation2 [shape = 'f32[1,1]{1,0:T(1,128)S(1)}', space=vmem, size = 0x200, scoped, tag = 'scoped memory for tpu_custom_call.1']
  %s0 = inlined_call_operand.vmem [shape: f32[1,1,128], index: 0, kind: input, shape index: {}]
  %s1 = inlined_call_operand.vmem [shape: f32[32,1], index: 1, kind: input, shape index: {}]
  %s2 = inlined_call_operand.vmem [shape: f32[32,1], index: 2, kind: input, shape index: {}]
  %s3 = inlined_call_operand.vmem [shape: bf16[2,32,32], index: 3, kind: input, shape index: {}]
  %s4 = inlined_call_operand.vmem [shape: f32[2,32,1], index: 4, kind: input, shape index: {}]
  %s5 = inlined_call_operand.vmem [shape: f32[32,1], index: 5, kind: input, shape index: {}]
  %s6 = inlined_call_operand.<no memory space> [shape: f32[1,1], index: 6, kind: input, shape index: {}]
  %s7 = inlined_call_operand.hbm [shape: f32[1,1,128], index: 7, kind: output, shape index: {}]
  %s8 = sld [smem:[#allocation0]]
  $region38: #{tpu_custom_call.1} parent=0
    _
  %s10 = ssub.s32 1, %s8
  %s11 = scalar_select 0, %s10, %s8
  %v12 = vstv %s6
  %13 = vst [vmem:[#allocation2] sm:$0x1] %v12
  $region1: #{tpu_custom_call.1} parent=0
    #allocation3 [shape = 'u8[512]{0}', space=vmem, size = 0x400, scoped, tag = 'output window, operand 0, single buffered']
    #allocation4 [shape = 's32[1]{0}', space=sflag, size = 0x4, scoped, tag = 'scoped memory for tpu_custom_call.1']
    %14 = vsyncpa [#allocation4], 0
    // Predicated region
    $region2: #{tpu_custom_call.1} parent=1 // pred_check
      _
    $region3: #{tpu_custom_call.1} parent=1 // pred_check_branch
      %16 = sbr.rel (0) target = $region5
    $region4: #{tpu_custom_call.1} parent=1 // pred_region
      _
    $region5: #{tpu_custom_call.1} parent=1 // pred_fallthru
      _
    // Predicated region
    $region6: #{tpu_custom_call.1} parent=1 // pred_check
      _
    $region7: #{tpu_custom_call.1} parent=1 // pred_check_branch
      %18 = sbr.rel (0) target = $region9
    $region8: #{tpu_custom_call.1} parent=1 // pred_region
      _
    $region9: #{tpu_custom_call.1} parent=1 // pred_fallthru
      _
    // Predicated region
    $region10: #{tpu_custom_call.1} parent=1 // pred_check
      _
    $region11: #{tpu_custom_call.1} parent=1 // pred_check_branch
      %20 = sbr.rel (0) target = $region13
    $region12: #{tpu_custom_call.1} parent=1 // pred_region
      _
    $region13: #{tpu_custom_call.1} parent=1 // pred_fallthru
      _
    // Predicated region
    $region14: #{tpu_custom_call.1} parent=1 // pred_check
      _
    $region15: #{tpu_custom_call.1} parent=1 // pred_check_branch
      %22 = sbr.rel (0) target = $region17
    $region16: #{tpu_custom_call.1} parent=1 // pred_region
      _
    $region17: #{tpu_custom_call.1} parent=1 // pred_fallthru
      _
    // Predicated region
    $region18: #{tpu_custom_call.1} parent=1 // pred_check
      _
    $region19: #{tpu_custom_call.1} parent=1 // pred_check_branch
      %24 = sbr.rel (0) target = $region21
    $region20: #{tpu_custom_call.1} parent=1 // pred_region
      _
    $region21: #{tpu_custom_call.1} parent=1 // pred_fallthru
      _
    // Predicated region
    $region22: #{tpu_custom_call.1} parent=1 // pred_check
      _
    $region23: #{tpu_custom_call.1} parent=1 // pred_check_branch
      %26 = sbr.rel (0) target = $region25
    $region24: #{tpu_custom_call.1} parent=1 // pred_region
      _
    $region25: #{tpu_custom_call.1} parent=1 // pred_fallthru
      _
    // Predicated region
    $region26: #{tpu_custom_call.1} parent=1 // pred_check
      _
    $region27: #{tpu_custom_call.1} parent=1 // pred_check_branch
      %28 = sbr.rel (0) target = $region29
    $region28: #{tpu_custom_call.1} parent=1 // pred_region
      _
    $region29: #{tpu_custom_call.1} parent=1 // pred_fallthru
      _
    %v30 = vld [vmem:[%s0] sm:$0x1]
    %v31 = vld [vmem:[%s1] sm:$0xff]
    %v32 = vld [vmem:[%s1 + $0x8] sm:$0xff]
    %v33 = vld [vmem:[%s1 + $0x10] sm:$0xff]
    %v34 = vld [vmem:[%s1 + $0x18] sm:$0xff]
    %36 = vset.pattern.permute.xlu0 0
    %37 = vperm.xlu0 %36, %v31
    %v38 = vpop.permute.xlu0 %37
    %41 = vset.pattern.permute.xlu0 0
    %42 = vperm.xlu0 %41, %v32
    %v43 = vpop.permute.xlu0 %42
    %46 = vset.pattern.permute.xlu0 0
    %47 = vperm.xlu0 %46, %v33
    %v48 = vpop.permute.xlu0 %47
    %51 = vset.pattern.permute.xlu0 0
    %52 = vperm.xlu0 %51, %v34
    %v53 = vpop.permute.xlu0 %52
    %v56 = vlaneseq
    %v57 = vshrl.u32 %v56, 7
    %v58 = vsub.s32 0, %v57
    %v59 = vrot.slane %v30, %v58
    %v61 = vmul.f32 %v38, %v59
    %v62 = vmul.f32 %v43, %v59
    %v63 = vmul.f32 %v48, %v59
    %v64 = vmul.f32 %v53, %v59
    %v65 = vld [vmem:[%s2] sm:$0xff]
    %v66 = vld [vmem:[%s2 + $0x8] sm:$0xff]
    %v67 = vld [vmem:[%s2 + $0x10] sm:$0xff]
    %v68 = vld [vmem:[%s2 + $0x18] sm:$0xff]
    %70 = vset.pattern.permute.xlu0 0
    %71 = vperm.xlu0 %70, %v65
    %v72 = vpop.permute.xlu0 %71
    %75 = vset.pattern.permute.xlu0 0
    %76 = vperm.xlu0 %75, %v66
    %v77 = vpop.permute.xlu0 %76
    %80 = vset.pattern.permute.xlu0 0
    %81 = vperm.xlu0 %80, %v67
    %v82 = vpop.permute.xlu0 %81
    %85 = vset.pattern.permute.xlu0 0
    %86 = vperm.xlu0 %85, %v68
    %v87 = vpop.permute.xlu0 %86
    %v89 = vadd.f32 %v61, %v72
    %v90 = vadd.f32 %v62, %v77
    %v91 = vadd.f32 %v63, %v82
    %v92 = vadd.f32 %v64, %v87
    %v93 = vld [vmem:[%s3] sm:$0xf]
    %v94 = vld [vmem:[%s3 + $0x4] sm:$0xf]
    %v95 = vld [vmem:[%s3 + $0x8] sm:$0xf]
    %v96 = vld [vmem:[%s3 + $0xc] sm:$0xf]
    %v97 = vpack.c.bf16 %v90, %v89
    %v98 = vpack.c.bf16 %v92, %v91
    %v99 = vld [vmem:[%s4] sm:$0xff]
    %v100 = vld [vmem:[%s4 + $0x8] sm:$0xff]
    %v101 = vld [vmem:[%s4 + $0x10] sm:$0xff]
    %v102 = vld [vmem:[%s4 + $0x18] sm:$0xff]
    %104 = vset.pattern.permute.xlu0 0
    %105 = vperm.xlu0 %104, %v99
    %v106 = vpop.permute.xlu0 %105
    %109 = vset.pattern.permute.xlu0 0
    %110 = vperm.xlu0 %109, %v100
    %v111 = vpop.permute.xlu0 %110
    %114 = vset.pattern.permute.xlu0 0
    %115 = vperm.xlu0 %114, %v101
    %v116 = vpop.permute.xlu0 %115
    %119 = vset.pattern.permute.xlu0 0
    %120 = vperm.xlu0 %119, %v102
    %v121 = vpop.permute.xlu0 %120
    %v127 = vunpack.c.l.b16 %v93
    %v128 = vunpack.c.l.b16 %v94
    %v129 = vunpack.c.l.b16 %v95
    %v130 = vunpack.c.l.b16 %v96
    %v131 = vpack.c.b16 %v128, %v127
    %v132 = vpack.c.b16 %v130, %v129
    %vm133 = vcmask 261120
    %v135 = vsel %vm133, %v131, 0
    %v138 = vsel %vm133, %v132, 0
    %140 = vmatprep.subr.bf16.mxu0 0
    %141 = vmatpush1.bf16.msra.mxu0 %v97
    %142 = vmatprep.subr.bf16.mxu0 0
    %143 = vmatpush1.bf16.msra.mxu0 %v98
    %144 = vmatprep.subr.bf16.mxu0 0
    %145 = vmatpush1.bf16.msra.mxu0 0
    %146 = vmatprep.subr.bf16.mxu0 0
    %147 = vmatpush1.bf16.msra.mxu0 0
    %148 = vmatprep.subr.bf16.mxu0 0
    %149 = vmatpush1.bf16.msra.mxu0 0
    %150 = vmatprep.subr.bf16.mxu0 0
    %151 = vmatpush1.bf16.msra.mxu0 0
    %152 = vmatprep.subr.bf16.mxu0 0
    %153 = vmatpush1.bf16.msra.mxu0 0
    %154 = vmatprep.subr.bf16.mxu0 0
    %155 = vmatpush1.bf16.msra.mxu0 0
    %156 = vmatprep.subr.bf16.mxu0 0
    %157 = vmatpush1.bf16.msra.mxu0 0
    %158 = vmatprep.subr.bf16.mxu0 0
    %159 = vmatpush1.bf16.msra.mxu0 0
    %160 = vmatprep.subr.bf16.mxu0 0
    %161 = vmatpush1.bf16.msra.mxu0 0
    %162 = vmatprep.subr.bf16.mxu0 0
    %163 = vmatpush1.bf16.msra.mxu0 0
    %164 = vmatprep.subr.bf16.mxu0 0
    %165 = vmatpush1.bf16.msra.mxu0 0
    %166 = vmatprep.subr.bf16.mxu0 0
    %167 = vmatpush1.bf16.msra.mxu0 0
    %168 = vmatprep.subr.bf16.mxu0 0
    %169 = vmatpush1.bf16.msra.mxu0 0
    %170 = vmatprep.subr.bf16.mxu0 0
    %171 = vmatpush1.bf16.msra.mxu0 0
    %172 = vmatprep.mubr.bf16.mxu0 0
    %173 = vmatmul.mubr.bf16.gmra.mrb[0].mxu0 %v135
    %v174 = vpop.f32.mrb[0].mxu0
    %v175 = vadd.f32 %v106, %v174
    %v176 = vpop.f32.mrb[0].mxu0
    %v177 = vpop.f32.mrb[0].mxu0
    %v178 = vadd.f32 %v111, %v177
    %v179 = vpop.f32.mrb[0].mxu0
    %180 = vmatprep.mubr.bf16.mxu0 0
    %181 = vmatmul.mubr.bf16.gmra.mrb[0].mxu0 %v138
    %v182 = vpop.f32.mrb[0].mxu0
    %v183 = vadd.f32 %v116, %v182
    %v184 = vpop.f32.mrb[0].mxu0
    %v185 = vpop.f32.mrb[0].mxu0
    %v186 = vadd.f32 %v121, %v185
    %v187 = vpop.f32.mrb[0].mxu0
    %188 = vdwg.mxu0
    %v189 = vtanh.pop %v175
    %v190 = vtanh.pop %v178
    %v191 = vtanh.pop %v183
    %v192 = vtanh.pop %v186
    %v193 = vadd.f32 %v189, %v89
    %v194 = vadd.f32 %v190, %v90
    %v195 = vadd.f32 %v191, %v91
    %v196 = vadd.f32 %v192, %v92
    %s197 = scalar_lea.vmem %s3, 16
    %v198 = vld [vmem:[%s197] sm:$0xf]
    %v199 = vld [vmem:[%s197 + $0x4] sm:$0xf]
    %v200 = vld [vmem:[%s197 + $0x8] sm:$0xf]
    %v201 = vld [vmem:[%s197 + $0xc] sm:$0xf]
    %v202 = vpack.c.bf16 %v194, %v193
    %v203 = vpack.c.bf16 %v196, %v195
    %s204 = scalar_lea.vmem %s4, 32
    %v205 = vld [vmem:[%s204] sm:$0xff]
    %v206 = vld [vmem:[%s204 + $0x8] sm:$0xff]
    %v207 = vld [vmem:[%s204 + $0x10] sm:$0xff]
    %v208 = vld [vmem:[%s204 + $0x18] sm:$0xff]
    %210 = vset.pattern.permute.xlu0 0
    %211 = vperm.xlu0 %210, %v205
    %v212 = vpop.permute.xlu0 %211
    %215 = vset.pattern.permute.xlu0 0
    %216 = vperm.xlu0 %215, %v206
    %v217 = vpop.permute.xlu0 %216
    %220 = vset.pattern.permute.xlu0 0
    %221 = vperm.xlu0 %220, %v207
    %v222 = vpop.permute.xlu0 %221
    %225 = vset.pattern.permute.xlu0 0
    %226 = vperm.xlu0 %225, %v208
    %v227 = vpop.permute.xlu0 %226
    %v233 = vunpack.c.l.b16 %v198
    %v234 = vunpack.c.l.b16 %v199
    %v235 = vunpack.c.l.b16 %v200
    %v236 = vunpack.c.l.b16 %v201
    %v237 = vpack.c.b16 %v234, %v233
    %v238 = vpack.c.b16 %v236, %v235
    %v240 = vsel %vm133, %v237, 0
    %v243 = vsel %vm133, %v238, 0
    %245 = vmatprep.subr.bf16.mxu0 0
    %246 = vmatpush1.bf16.msra.mxu0 %v202
    %247 = vmatprep.subr.bf16.mxu0 0
    %248 = vmatpush1.bf16.msra.mxu0 %v203
    %249 = vmatprep.subr.bf16.mxu0 0
    %250 = vmatpush1.bf16.msra.mxu0 0
    %251 = vmatprep.subr.bf16.mxu0 0
    %252 = vmatpush1.bf16.msra.mxu0 0
    %253 = vmatprep.subr.bf16.mxu0 0
    %254 = vmatpush1.bf16.msra.mxu0 0
    %255 = vmatprep.subr.bf16.mxu0 0
    %256 = vmatpush1.bf16.msra.mxu0 0
    %257 = vmatprep.subr.bf16.mxu0 0
    %258 = vmatpush1.bf16.msra.mxu0 0
    %259 = vmatprep.subr.bf16.mxu0 0
    %260 = vmatpush1.bf16.msra.mxu0 0
    %261 = vmatprep.subr.bf16.mxu0 0
    %262 = vmatpush1.bf16.msra.mxu0 0
    %263 = vmatprep.subr.bf16.mxu0 0
    %264 = vmatpush1.bf16.msra.mxu0 0
    %265 = vmatprep.subr.bf16.mxu0 0
    %266 = vmatpush1.bf16.msra.mxu0 0
    %267 = vmatprep.subr.bf16.mxu0 0
    %268 = vmatpush1.bf16.msra.mxu0 0
    %269 = vmatprep.subr.bf16.mxu0 0
    %270 = vmatpush1.bf16.msra.mxu0 0
    %271 = vmatprep.subr.bf16.mxu0 0
    %272 = vmatpush1.bf16.msra.mxu0 0
    %273 = vmatprep.subr.bf16.mxu0 0
    %274 = vmatpush1.bf16.msra.mxu0 0
    %275 = vmatprep.subr.bf16.mxu0 0
    %276 = vmatpush1.bf16.msra.mxu0 0
    %277 = vmatprep.mubr.bf16.mxu0 0
    %278 = vmatmul.mubr.bf16.gmra.mrb[0].mxu0 %v240
    %v279 = vpop.f32.mrb[0].mxu0
    %v280 = vadd.f32 %v212, %v279
    %v281 = vpop.f32.mrb[0].mxu0
    %v282 = vpop.f32.mrb[0].mxu0
    %v283 = vadd.f32 %v217, %v282
    %v284 = vpop.f32.mrb[0].mxu0
    %285 = vmatprep.mubr.bf16.mxu0 0
    %286 = vmatmul.mubr.bf16.gmra.mrb[0].mxu0 %v243
    %v287 = vpop.f32.mrb[0].mxu0
    %v288 = vadd.f32 %v222, %v287
    %v289 = vpop.f32.mrb[0].mxu0
    %v290 = vpop.f32.mrb[0].mxu0
    %v291 = vadd.f32 %v227, %v290
    %v292 = vpop.f32.mrb[0].mxu0
    %293 = vdwg.mxu0
    %v294 = vtanh.pop %v280
    %v295 = vtanh.pop %v283
    %v296 = vtanh.pop %v288
    %v297 = vtanh.pop %v291
    %v298 = vadd.f32 %v294, %v193
    %v299 = vadd.f32 %v295, %v194
    %v300 = vadd.f32 %v296, %v195
    %v301 = vadd.f32 %v297, %v196
    %v302 = vld [vmem:[%s5] sm:$0xff]
    %v303 = vld [vmem:[%s5 + $0x8] sm:$0xff]
    %v304 = vld [vmem:[%s5 + $0x10] sm:$0xff]
    %v305 = vld [vmem:[%s5 + $0x18] sm:$0xff]
    %307 = vset.pattern.permute.xlu0 0
    %308 = vperm.xlu0 %307, %v302
    %v309 = vpop.permute.xlu0 %308
    %312 = vset.pattern.permute.xlu0 0
    %313 = vperm.xlu0 %312, %v303
    %v314 = vpop.permute.xlu0 %313
    %317 = vset.pattern.permute.xlu0 0
    %318 = vperm.xlu0 %317, %v304
    %v319 = vpop.permute.xlu0 %318
    %322 = vset.pattern.permute.xlu0 0
    %323 = vperm.xlu0 %322, %v305
    %v324 = vpop.permute.xlu0 %323
    %v326 = vmul.f32 %v309, %v298
    %v327 = vmul.f32 %v314, %v299
    %v328 = vmul.f32 %v319, %v300
    %v329 = vmul.f32 %v324, %v301
    %v330 = vadd.f32 %v326, %v327
    %v331 = vadd.f32 %v330, %v328
    %v332 = vadd.f32 %v331, %v329
    %v333 = vrot.slane %v332, 4
    %v334 = vadd.f32 %v332, %v333
    %v335 = vrot.slane %v334, 2
    %v336 = vadd.f32 %v334, %v335
    %v337 = vrot.slane %v336, 1
    %v338 = vadd.f32 %v336, %v337
    %v339 = vld [vmem:[#allocation2] sm:$0x1]
    %341 = vset.pattern.permute.xlu0 0
    %342 = vperm.xlu0 %341, %v339
    %v343 = vpop.permute.xlu0 %342
    %v345 = vlaneseq
    %v346 = vshrl.u32 %v345, 7
    %v347 = vsub.s32 0, %v346
    %v348 = vrot.slane %v343, %v347
    %v349 = vadd.f32 %v338, %v348
    %350 = vst [vmem:[#allocation3] sm:$0x1] %v349
    // Predicated region
    $region30: #{tpu_custom_call.1} parent=1 // pred_check
      _
    $region31: #{tpu_custom_call.1} parent=1 // pred_check_branch
      %352 = sbr.rel (0) target = $region33
    $region32: #{tpu_custom_call.1} parent=1 // pred_region
      %s354 = ssub.s32 16, 16
      %355 = vsyncadd [#allocation4], %s354
      %s357 = sshll.u32 [#allocation3], 4
      %s358 = int_to_ptr.vmem [resolvable:$true] %s357
      %360 = dma.vmem_to_hbm [thread:$0]  %s358, 16, %s7, [#allocation4]
    $region33: #{tpu_custom_call.1} parent=1 // pred_fallthru
      _
    // Predicated region
    $region34: #{tpu_custom_call.1} parent=1 // pred_check
      _
    $region35: #{tpu_custom_call.1} parent=1 // pred_check_branch
      %362 = sbr.rel (0) target = $region37
    $region36: #{tpu_custom_call.1} parent=1 // pred_region
      %363 = dma.done [#allocation4], 16
    $region37: #{tpu_custom_call.1} parent=1 // pred_fallthru
      _
    %364 = vsyncpa [#allocation4], 1

</llo_original>
